<compile_context>
chip_gen: v7x
topology: tpu7x:2x2x1
jax: 0.10.0
libtpu: 0.0.40
codegen_flags: <defaults>
</compile_context>

<pallas_src>
import math

import jax
import jax.numpy as jnp
import numpy as np
from jax.experimental import pallas as pl
from jax.experimental.pallas import tpu as pltpu


def _round_up(a, b):
    return (a + b - 1) // b * b


def node_model_kernel(sb_ref, nb_ref, dest_ref, ea_ref, xf_ref, wxf_ref,
                      wst_ref, b_ref, out_ref, acc_ref):
    i = pl.program_id(0)          # node-tile index (parallel)
    j = pl.program_id(1)          # edge-block step inside this tile's range

    d = out_ref.shape[0]          # hidden dim (sublanes)
    tn = out_ref.shape[1]         # nodes per tile (lanes)

    # ---- init accumulator at the start of this node tile's edge reduction ----
    @pl.when(j == 0)
    def _():
        acc_ref[...] = jnp.zeros_like(acc_ref)

    # ---- blocked transposed scatter-sum on the MXU ----
    # Only the first nb_ref[i] steps carry real edge blocks for this node tile;
    # later steps revisit the last block (no DMA) and are skipped here.
    @pl.when(j < nb_ref[i])
    def _():
        # dest column (tile_e, 1); offset applied on the small side.
        dest_local = dest_ref[...] - i * tn
        node_lane = jax.lax.broadcasted_iota(jnp.int32, (1, tn), 1)
        onehot_t = (dest_local == node_lane).astype(jnp.bfloat16)   # (te, tn)
        # ea^T carries [edge_attr ; 1] rows -> one matmul gives sums AND counts.
        acc_ref[...] += jnp.dot(ea_ref[...], onehot_t,
                                preferred_element_type=jnp.float32)  # (d+1, tn)

    # ---- finalize: MLP on the last step only (one lane-dense store per tile) ----
    @pl.when(j == pl.num_programs(1) - 1)
    def _():
        seg_sum = acc_ref[:d, :]                                     # (d, tn)  f32
        cnt = acc_ref[d:, :]                                         # (1, tn)  f32
        inv = pl.reciprocal(jnp.maximum(cnt, 1.0), approx=True)      # EUP vrcp
        seg_mean = (seg_sum * inv).astype(jnp.bfloat16)              # empty rows -> 0

        # layer 1: W1^T @ cat([x, mean, f])^T + b1, split as two bf16 matmuls
        h = (jnp.dot(wxf_ref[...], xf_ref[...],
                     preferred_element_type=jnp.float32)
             + jnp.dot(wst_ref[0], seg_mean,
                       preferred_element_type=jnp.float32)
             + b_ref[0])
        h = h * jax.nn.sigmoid(h)                                    # SiLU (f32)

        # layer 2
        h = jnp.dot(wst_ref[1], h.astype(jnp.bfloat16),
                    preferred_element_type=jnp.float32) + b_ref[1]
        h = h * jax.nn.sigmoid(h)

        # layer 3 (no activation)
        h = jnp.dot(wst_ref[2], h.astype(jnp.bfloat16),
                    preferred_element_type=jnp.float32) + b_ref[2]
        out_ref[...] = h.astype(out_ref.dtype)


def node_model_forward(x, edge_index, edge_attr, f, params, *,
                       tile_n=128, tile_e=1024):
    """x: [N, D] f32, edge_index: [2, E] i32, edge_attr: [E, D] f32, f: [N, Ff] f32."""
    N, D = x.shape
    E = edge_attr.shape[0]
    Ff = f.shape[1]

    # ---- tile sizes / padding ----
    tile_n = min(_round_up(tile_n, 8), _round_up(N, 8))
    tile_e = min(_round_up(tile_e, 128), _round_up(E, 128))
    N_pad = _round_up(N, tile_n)
    E_pad = _round_up(E, tile_e)
    n_tiles = N_pad // tile_n

    # ---- host-side edge schedule: sort edges by dest, bucket into blocks ----
    # TODO(synk): schedule uses concrete host values -> wrapper is not
    #   jit-traceable; under jit fall back to a static worst-case edge grid.
    dest_np = np.asarray(edge_index[1], dtype=np.int32)
    order_np = np.argsort(dest_np, kind="stable")
    dest_sorted_np = dest_np[order_np]
    tile_starts = np.arange(n_tiles, dtype=np.int64) * tile_n
    lo = np.searchsorted(dest_sorted_np, tile_starts, side="left")
    hi = np.searchsorted(dest_sorted_np, tile_starts + tile_n, side="left")
    has_edges = hi > lo
    start_blk = np.where(has_edges, lo // tile_e, 0).astype(np.int32)
    num_blk = np.where(has_edges,
                       (hi - 1) // tile_e - lo // tile_e + 1, 0).astype(np.int32)
    grid_e = int(max(int(num_blk.max()), 1))

    # ---- device-side layout plumbing (features on sublanes, nodes/edges on lanes) ----
    order = jnp.asarray(order_np)
    dest_sorted = jnp.asarray(dest_sorted_np, dtype=jnp.int32)
    # padded edges get dest = N_pad so they never match any node lane
    dest_col = jnp.full((E_pad, 1), N_pad, jnp.int32).at[:E, 0].set(dest_sorted)

    ea_sorted = edge_attr[order]                                       # [E, D]
    ea_t = jnp.concatenate(
        [ea_sorted.T, jnp.ones((1, E), edge_attr.dtype)], axis=0)      # [D+1, E]
    ea_pad = jnp.zeros((D + 1, E_pad), jnp.bfloat16).at[:, :E].set(
        ea_t.astype(jnp.bfloat16))

    xf_t = jnp.concatenate([x, f], axis=1).T                           # [D+Ff, N]
    xf_pad = jnp.zeros((D + Ff, N_pad), jnp.bfloat16).at[:, :N].set(
        xf_t.astype(jnp.bfloat16))

    w1 = params["w1"]                              # [2D+Ff, D], rows = [x | mean | f]
    wxf_t = jnp.concatenate([w1[:D], w1[2 * D:]],
                            axis=0).T.astype(jnp.bfloat16)             # [D, D+Ff]
    wst_t = jnp.stack([w1[D:2 * D].T, params["w2"].T, params["w3"].T]
                      ).astype(jnp.bfloat16)                           # [3, D, D]
    b_col = jnp.stack([params["b1"].T, params["b2"].T, params["b3"].T]
                      ).astype(jnp.float32)                            # [3, D, 1]

    grid = (n_tiles, grid_e)

    def edge_block(i, j, sb, nb):
        # clamp so out-of-range steps revisit the last valid block (skipped in-kernel)
        return sb[i] + jnp.minimum(j, jnp.maximum(nb[i] - 1, 0))

    out_t = pl.pallas_call(
        node_model_kernel,
        out_shape=jax.ShapeDtypeStruct((D, N_pad), jnp.float32),
        grid_spec=pltpu.PrefetchScalarGridSpec(
            num_scalar_prefetch=2,
            grid=grid,
            in_specs=[
                pl.BlockSpec((tile_e, 1),
                             lambda i, j, sb, nb: (edge_block(i, j, sb, nb), 0)),
                pl.BlockSpec((D + 1, tile_e),
                             lambda i, j, sb, nb: (0, edge_block(i, j, sb, nb))),
                pl.BlockSpec((D + Ff, tile_n), lambda i, j, sb, nb: (0, i)),
                pl.BlockSpec((D, D + Ff), lambda i, j, sb, nb: (0, 0)),
                pl.BlockSpec((3, D, D), lambda i, j, sb, nb: (0, 0, 0)),
                pl.BlockSpec((3, D, 1), lambda i, j, sb, nb: (0, 0, 0)),
            ],
            out_specs=pl.BlockSpec((D, tile_n), lambda i, j, sb, nb: (0, i)),
            scratch_shapes=[pltpu.VMEM((D + 1, tile_n), jnp.float32)],
        ),
        compiler_params=pltpu.CompilerParams(
            dimension_semantics=("parallel", "arbitrary"),
            vmem_limit_bytes=32 * 1024 * 1024,
        ),
    )(jnp.asarray(start_blk), jnp.asarray(num_blk),
      dest_col, ea_pad, xf_pad, wxf_t, wst_t, b_col)

    return out_t[:, :N].T


def node_model_reference(x, edge_index, edge_attr, f, params):
    """Pure-JAX f32 reference mirroring the PyTorch forward."""
    N, D = x.shape
    dest = edge_index[1]
    seg_sum = jax.ops.segment_sum(edge_attr, dest, num_segments=N)
    seg_cnt = jax.ops.segment_sum(jnp.ones((edge_attr.shape[0],)), dest,
                                  num_segments=N)
    seg_mean = seg_sum / jnp.maximum(seg_cnt, 1.0)[:, None]
    h = jnp.concatenate([x, seg_mean, f], axis=1)
    h = h @ params["w1"] + params["b1"][0]
    h = h * jax.nn.sigmoid(h)
    h = h @ params["w2"] + params["b2"][0]
    h = h * jax.nn.sigmoid(h)
    h = h @ params["w3"] + params["b3"][0]
    return h


def init_params(key, in_dim, hidden):
    """Deterministic init matching PyTorch Linear shapes (stored as [in, out])."""
    def linear(k, fan_in, fan_out):
        kw, kb = jax.random.split(k)
        bound = 1.0 / math.sqrt(fan_in)
        w = jax.random.uniform(kw, (fan_in, fan_out), jnp.float32, -bound, bound)
        b = jax.random.uniform(kb, (1, fan_out), jnp.float32, -bound, bound)
        return w, b

    k1, k2, k3 = jax.random.split(key, 3)
    w1, b1 = linear(k1, in_dim, hidden)
    w2, b2 = linear(k2, hidden, hidden)
    w3, b3 = linear(k3, hidden, hidden)
    return {"w1": w1, "b1": b1, "w2": w2, "b2": b2, "w3": w3, "b3": b3}


if __name__ == "__main__":
    # NodeModel(n_hidden=2, dim_hidden=32, dims={'f': 4, 'g': 2})
    #   -> MLP layer_vec = [2*32 + 4 + 2, 32, 32, 32]
    n_hidden = 2
    dim_hidden = 32
    dims = {"f": 4, "g": 2}
    Ff = dims["f"] + dims["g"]

    key = jax.random.PRNGKey(0)
    kp, kdata = jax.random.split(key)
    params = init_params(kp, 2 * dim_hidden + Ff, dim_hidden)

    cases = [
        # (N, E, tile_n, tile_e)
        (16, 48, 128, 512),     # toy spec size: single node tile, single edge block
        (384, 1536, 128, 256),  # multi node-tile / multi edge-block: exercises the
                                # sorted-edge block skipping + megacore-parallel axis
    ]
    for idx, (N, E, tile_n, tile_e) in enumerate(cases):
        kc = jax.random.fold_in(kdata, idx)
        kx, ke, kf, ki = jax.random.split(kc, 4)
        x = jax.random.normal(kx, (N, dim_hidden), jnp.float32)
        edge_attr = jax.random.normal(ke, (E, dim_hidden), jnp.float32)
        f = jax.random.normal(kf, (N, Ff), jnp.float32)
        src = jax.random.randint(ki, (E,), 0, N, jnp.int32)
        dest = jax.random.randint(jax.random.fold_in(ki, 1), (E,), 0, N, jnp.int32)
        edge_index = jnp.stack([src, dest], axis=0)

        out = node_model_forward(x, edge_index, edge_attr, f, params,
                                 tile_n=tile_n, tile_e=tile_e)
        out = jax.block_until_ready(out)

        ref = node_model_reference(x, edge_index, edge_attr, f, params)
        # bf16 MXU operands (f32 accumulation) -> relaxed tolerance vs f32 reference.
        np.testing.assert_allclose(np.asarray(out), np.asarray(ref),
                                   rtol=5e-2, atol=5e-2)

    print("KERNEL_OK")
</pallas_src>

<mosaic_0001>
module attributes {stable_mosaic.version = 11 : i64} {
  func.func @node_model_kernel(%arg0: i32, %arg1: i32, %arg2: memref<1xi32, #tpu.memory_space<smem>>, %arg3: memref<1xi32, #tpu.memory_space<smem>>, %arg4: memref<128x1xi32, #tpu.memory_space<vmem>>, %arg5: memref<33x128xbf16, #tpu.memory_space<vmem>>, %arg6: memref<38x16xbf16, #tpu.memory_space<vmem>>, %arg7: memref<32x38xbf16, #tpu.memory_space<vmem>>, %arg8: memref<3x32x32xbf16, #tpu.memory_space<vmem>>, %arg9: memref<3x32x1xf32, #tpu.memory_space<vmem>>, %arg10: memref<32x16xf32, #tpu.memory_space<vmem>>, %arg11: memref<33x16xf32, #tpu.memory_space<vmem>>) attributes {dimension_semantics = [#tpu.dimension_semantics<parallel>, #tpu.dimension_semantics<arbitrary>], iteration_bounds = array<i64: 1, 1>, scalar_prefetch = 2 : i64, scratch_operands = 1 : i64, tpu.core_type = #tpu.core_type<tc>, window_params = [{transform_indices = @transform_0, window_bounds = array<i64: 128, 1>}, {transform_indices = @transform_1, window_bounds = array<i64: 33, 128>}, {transform_indices = @transform_2, window_bounds = array<i64: 38, 16>}, {pipeline_mode = #tpu.pipeline_mode<synchronous>, transform_indices = @transform_3, window_bounds = array<i64: 32, 38>}, {pipeline_mode = #tpu.pipeline_mode<synchronous>, transform_indices = @transform_4, window_bounds = array<i64: 3, 32, 32>}, {pipeline_mode = #tpu.pipeline_mode<synchronous>, transform_indices = @transform_5, window_bounds = array<i64: 3, 32, 1>}, {transform_indices = @transform_6, window_bounds = array<i64: 32, 16>}]} {
    %c0_i32 = arith.constant 0 : i32
    %0 = arith.cmpi eq, %arg1, %c0_i32 : i32
    %1 = arith.extui %0 : i1 to i32
    %c0_i32_0 = arith.constant 0 : i32
    %2 = arith.cmpi ne, %1, %c0_i32_0 : i32
    scf.if %2 {
      %cst = arith.constant 0.000000e+00 : f32
      %11 = vector.broadcast %cst : f32 to vector<33x16xf32>
      %c0 = arith.constant 0 : index
      %c0_4 = arith.constant 0 : index
      %12 = vector.load %arg11[%c0, %c0_4] : memref<33x16xf32, #tpu.memory_space<vmem>>, vector<33x16xf32>
      tpu.vector_store %arg11[%c0, %c0_4], %11 {strides = array<i32>} : memref<33x16xf32, #tpu.memory_space<vmem>>, vector<33x16xf32>,
    } else {
    }
    %3 = arith.index_cast %arg0 : i32 to index
    %4 = memref.load %arg3[%3] : memref<1xi32, #tpu.memory_space<smem>>
    %5 = arith.cmpi slt, %arg1, %4 : i32
    %6 = arith.extui %5 : i1 to i32
    %c0_i32_1 = arith.constant 0 : i32
    %7 = arith.cmpi ne, %6, %c0_i32_1 : i32
    scf.if %7 {
      %c0 = arith.constant 0 : index
      %c0_4 = arith.constant 0 : index
      %11 = vector.load %arg4[%c0, %c0_4] : memref<128x1xi32, #tpu.memory_space<vmem>>, vector<128x1xi32>
      %c16_i32 = arith.constant 16 : i32
      %12 = arith.muli %arg0, %c16_i32 : i32
      %13 = vector.broadcast %12 : i32 to vector<128x1xi32>
      %14 = arith.subi %11, %13 : vector<128x1xi32>
      %15 = tpu.iota {dimensions = array<i32: 1>} : vector<1x16xi32>
      %16 = vector.broadcast %14 : vector<128x1xi32> to vector<128x16xi32>
      %17 = vector.broadcast %15 : vector<1x16xi32> to vector<128x16xi32>
      %18 = arith.cmpi eq, %16, %17 : vector<128x16xi32>
      %19 = arith.extui %18 : vector<128x16xi1> to vector<128x16xi32>
      %20 = arith.sitofp %19 : vector<128x16xi32> to vector<128x16xf32>
      %21 = arith.truncf %20 : vector<128x16xf32> to vector<128x16xbf16>
      %c0_5 = arith.constant 0 : index
      %c0_6 = arith.constant 0 : index
      %22 = vector.load %arg11[%c0_5, %c0_6] : memref<33x16xf32, #tpu.memory_space<vmem>>, vector<33x16xf32>
      %c0_7 = arith.constant 0 : index
      %c0_8 = arith.constant 0 : index
      %23 = vector.load %arg5[%c0_7, %c0_8] : memref<33x128xbf16, #tpu.memory_space<vmem>>, vector<33x128xbf16>
      %cst = arith.constant dense<0.000000e+00> : vector<33x16xf32>
      %24 = tpu.matmul %23, %21, %cst {dimension_numbers = #tpu.dot_dimension_numbers<[1], [0], [0], [1], [0, 0, 1, 1], [], []>} : vector<33x128xbf16>, vector<128x16xbf16>, vector<33x16xf32> -> vector<33x16xf32>
      %25 = arith.addf %22, %24 : vector<33x16xf32>
      %c0_9 = arith.constant 0 : index
      %c0_10 = arith.constant 0 : index
      %26 = vector.load %arg11[%c0_9, %c0_10] : memref<33x16xf32, #tpu.memory_space<vmem>>, vector<33x16xf32>
      tpu.vector_store %arg11[%c0_9, %c0_10], %25 {strides = array<i32>} : memref<33x16xf32, #tpu.memory_space<vmem>>, vector<33x16xf32>,
    } else {
    }
    %c0_i32_2 = arith.constant 0 : i32
    %8 = arith.cmpi eq, %arg1, %c0_i32_2 : i32
    %9 = arith.extui %8 : i1 to i32
    %c0_i32_3 = arith.constant 0 : i32
    %10 = arith.cmpi ne, %9, %c0_i32_3 : i32
    scf.if %10 {
      %c0 = arith.constant 0 : index
      %c0_4 = arith.constant 0 : index
      %11 = vector.load %arg11[%c0, %c0_4] : memref<33x16xf32, #tpu.memory_space<vmem>>, vector<32x16xf32>
      %c32 = arith.constant 32 : index
      %c0_5 = arith.constant 0 : index
      %12 = vector.load %arg11[%c32, %c0_5] : memref<33x16xf32, #tpu.memory_space<vmem>>, vector<1x16xf32>
      %cst = arith.constant 1.000000e+00 : f32
      %13 = vector.broadcast %cst : f32 to vector<1x16xf32>
      %14 = arith.maximumf %12, %13 : vector<1x16xf32>
      %15 = tpu.reciprocal %14 {approx = true} : vector<1x16xf32> -> vector<1x16xf32>
      %16 = vector.broadcast %15 : vector<1x16xf32> to vector<32x16xf32>
      %17 = arith.mulf %11, %16 : vector<32x16xf32>
      %18 = arith.truncf %17 : vector<32x16xf32> to vector<32x16xbf16>
      %c0_6 = arith.constant 0 : index
      %c0_7 = arith.constant 0 : index
      %19 = vector.load %arg7[%c0_6, %c0_7] : memref<32x38xbf16, #tpu.memory_space<vmem>>, vector<32x38xbf16>
      %c0_8 = arith.constant 0 : index
      %c0_9 = arith.constant 0 : index
      %20 = vector.load %arg6[%c0_8, %c0_9] : memref<38x16xbf16, #tpu.memory_space<vmem>>, vector<38x16xbf16>
      %cst_10 = arith.constant dense<0.000000e+00> : vector<32x16xf32>
      %21 = tpu.matmul %19, %20, %cst_10 {dimension_numbers = #tpu.dot_dimension_numbers<[1], [0], [0], [1], [0, 0, 1, 1], [], []>} : vector<32x38xbf16>, vector<38x16xbf16>, vector<32x16xf32> -> vector<32x16xf32>
      %c0_11 = arith.constant 0 : index
      %c0_12 = arith.constant 0 : index
      %c0_13 = arith.constant 0 : index
      %22 = vector.load %arg8[%c0_11, %c0_12, %c0_13] : memref<3x32x32xbf16, #tpu.memory_space<vmem>>, vector<1x32x32xbf16>
      %23 = vector.shape_cast %22 : vector<1x32x32xbf16> to vector<32x32xbf16>
      %cst_14 = arith.constant dense<0.000000e+00> : vector<32x16xf32>
      %24 = tpu.matmul %23, %18, %cst_14 {dimension_numbers = #tpu.dot_dimension_numbers<[1], [0], [0], [1], [0, 0, 1, 1], [], []>} : vector<32x32xbf16>, vector<32x16xbf16>, vector<32x16xf32> -> vector<32x16xf32>
      %25 = arith.addf %21, %24 : vector<32x16xf32>
      %c0_15 = arith.constant 0 : index
      %c0_16 = arith.constant 0 : index
      %c0_17 = arith.constant 0 : index
      %26 = vector.load %arg9[%c0_15, %c0_16, %c0_17] : memref<3x32x1xf32, #tpu.memory_space<vmem>>, vector<1x32x1xf32>
      %27 = vector.shape_cast %26 : vector<1x32x1xf32> to vector<32x1xf32>
      %28 = vector.broadcast %27 : vector<32x1xf32> to vector<32x16xf32>
      %29 = arith.addf %25, %28 : vector<32x16xf32>
      %30 = arith.negf %29 : vector<32x16xf32>
      %31 = math.exp %30 : vector<32x16xf32>
      %cst_18 = arith.constant 1.000000e+00 : f32
      %32 = vector.broadcast %cst_18 : f32 to vector<32x16xf32>
      %33 = arith.addf %32, %31 : vector<32x16xf32>
      %34 = arith.divf %32, %33 : vector<32x16xf32>
      %35 = arith.mulf %29, %34 : vector<32x16xf32>
      %c1 = arith.constant 1 : index
      %c0_19 = arith.constant 0 : index
      %c0_20 = arith.constant 0 : index
      %36 = vector.load %arg8[%c1, %c0_19, %c0_20] : memref<3x32x32xbf16, #tpu.memory_space<vmem>>, vector<1x32x32xbf16>
      %37 = vector.shape_cast %36 : vector<1x32x32xbf16> to vector<32x32xbf16>
      %38 = arith.truncf %35 : vector<32x16xf32> to vector<32x16xbf16>
      %cst_21 = arith.constant dense<0.000000e+00> : vector<32x16xf32>
      %39 = tpu.matmul %37, %38, %cst_21 {dimension_numbers = #tpu.dot_dimension_numbers<[1], [0], [0], [1], [0, 0, 1, 1], [], []>} : vector<32x32xbf16>, vector<32x16xbf16>, vector<32x16xf32> -> vector<32x16xf32>
      %c1_22 = arith.constant 1 : index
      %c0_23 = arith.constant 0 : index
      %c0_24 = arith.constant 0 : index
      %40 = vector.load %arg9[%c1_22, %c0_23, %c0_24] : memref<3x32x1xf32, #tpu.memory_space<vmem>>, vector<1x32x1xf32>
      %41 = vector.shape_cast %40 : vector<1x32x1xf32> to vector<32x1xf32>
      %42 = vector.broadcast %41 : vector<32x1xf32> to vector<32x16xf32>
      %43 = arith.addf %39, %42 : vector<32x16xf32>
      %44 = arith.negf %43 : vector<32x16xf32>
      %45 = math.exp %44 : vector<32x16xf32>
      %cst_25 = arith.constant 1.000000e+00 : f32
      %46 = vector.broadcast %cst_25 : f32 to vector<32x16xf32>
      %47 = arith.addf %46, %45 : vector<32x16xf32>
      %48 = arith.divf %46, %47 : vector<32x16xf32>
      %49 = arith.mulf %43, %48 : vector<32x16xf32>
      %c2 = arith.constant 2 : index
      %c0_26 = arith.constant 0 : index
      %c0_27 = arith.constant 0 : index
      %50 = vector.load %arg8[%c2, %c0_26, %c0_27] : memref<3x32x32xbf16, #tpu.memory_space<vmem>>, vector<1x32x32xbf16>
      %51 = vector.shape_cast %50 : vector<1x32x32xbf16> to vector<32x32xbf16>
      %52 = arith.truncf %49 : vector<32x16xf32> to vector<32x16xbf16>
      %cst_28 = arith.constant dense<0.000000e+00> : vector<32x16xf32>
      %53 = tpu.matmul %51, %52, %cst_28 {dimension_numbers = #tpu.dot_dimension_numbers<[1], [0], [0], [1], [0, 0, 1, 1], [], []>} : vector<32x32xbf16>, vector<32x16xbf16>, vector<32x16xf32> -> vector<32x16xf32>
      %c2_29 = arith.constant 2 : index
      %c0_30 = arith.constant 0 : index
      %c0_31 = arith.constant 0 : index
      %54 = vector.load %arg9[%c2_29, %c0_30, %c0_31] : memref<3x32x1xf32, #tpu.memory_space<vmem>>, vector<1x32x1xf32>
      %55 = vector.shape_cast %54 : vector<1x32x1xf32> to vector<32x1xf32>
      %56 = vector.broadcast %55 : vector<32x1xf32> to vector<32x16xf32>
      %57 = arith.addf %53, %56 : vector<32x16xf32>
      %c0_32 = arith.constant 0 : index
      %c0_33 = arith.constant 0 : index
      %58 = vector.load %arg10[%c0_32, %c0_33] : memref<32x16xf32, #tpu.memory_space<vmem>>, vector<32x16xf32>
      tpu.vector_store %arg10[%c0_32, %c0_33], %57 {strides = array<i32>} : memref<32x16xf32, #tpu.memory_space<vmem>>, vector<32x16xf32>,
    } else {
    }
    return
  }
  func.func @transform_0(%arg0: i32, %arg1: i32, %arg2: memref<1xi32, #tpu.memory_space<smem>>, %arg3: memref<1xi32, #tpu.memory_space<smem>>) -> (i32, i32) {
    %0 = arith.index_cast %arg0 : i32 to index
    %1 = memref.load %arg2[%0] : memref<1xi32, #tpu.memory_space<smem>>
    %2 = arith.index_cast %arg0 : i32 to index
    %3 = memref.load %arg3[%2] : memref<1xi32, #tpu.memory_space<smem>>
    %c1_i32 = arith.constant 1 : i32
    %4 = arith.subi %3, %c1_i32 : i32
    %c0_i32 = arith.constant 0 : i32
    %5 = arith.maxsi %4, %c0_i32 : i32
    %6 = arith.minsi %arg1, %5 : i32
    %7 = arith.addi %1, %6 : i32
    %c0_i32_0 = arith.constant 0 : i32
    %c0_i32_1 = arith.constant 0 : i32
    return %7, %c0_i32_0 : i32, i32
  }
  func.func @transform_1(%arg0: i32, %arg1: i32, %arg2: memref<1xi32, #tpu.memory_space<smem>>, %arg3: memref<1xi32, #tpu.memory_space<smem>>) -> (i32, i32) {
    %0 = arith.index_cast %arg0 : i32 to index
    %1 = memref.load %arg2[%0] : memref<1xi32, #tpu.memory_space<smem>>
    %2 = arith.index_cast %arg0 : i32 to index
    %3 = memref.load %arg3[%2] : memref<1xi32, #tpu.memory_space<smem>>
    %c1_i32 = arith.constant 1 : i32
    %4 = arith.subi %3, %c1_i32 : i32
    %c0_i32 = arith.constant 0 : i32
    %5 = arith.maxsi %4, %c0_i32 : i32
    %6 = arith.minsi %arg1, %5 : i32
    %7 = arith.addi %1, %6 : i32
    %c0_i32_0 = arith.constant 0 : i32
    %c0_i32_1 = arith.constant 0 : i32
    return %c0_i32_0, %7 : i32, i32
  }
  func.func @transform_2(%arg0: i32, %arg1: i32, %arg2: memref<1xi32, #tpu.memory_space<smem>>, %arg3: memref<1xi32, #tpu.memory_space<smem>>) -> (i32, i32) {
    %c0_i32 = arith.constant 0 : i32
    %c0_i32_0 = arith.constant 0 : i32
    return %c0_i32, %arg0 : i32, i32
  }
  func.func @transform_3(%arg0: i32, %arg1: i32, %arg2: memref<1xi32, #tpu.memory_space<smem>>, %arg3: memref<1xi32, #tpu.memory_space<smem>>) -> (i32, i32) {
    %c0_i32 = arith.constant 0 : i32
    %c0_i32_0 = arith.constant 0 : i32
    %c0_i32_1 = arith.constant 0 : i32
    return %c0_i32, %c0_i32_0 : i32, i32
  }
  func.func @transform_4(%arg0: i32, %arg1: i32, %arg2: memref<1xi32, #tpu.memory_space<smem>>, %arg3: memref<1xi32, #tpu.memory_space<smem>>) -> (i32, i32, i32) {
    %c0_i32 = arith.constant 0 : i32
    %c0_i32_0 = arith.constant 0 : i32
    %c0_i32_1 = arith.constant 0 : i32
    %c0_i32_2 = arith.constant 0 : i32
    return %c0_i32, %c0_i32_0, %c0_i32_1 : i32, i32, i32
  }
  func.func @transform_5(%arg0: i32, %arg1: i32, %arg2: memref<1xi32, #tpu.memory_space<smem>>, %arg3: memref<1xi32, #tpu.memory_space<smem>>) -> (i32, i32, i32) {
    %c0_i32 = arith.constant 0 : i32
    %c0_i32_0 = arith.constant 0 : i32
    %c0_i32_1 = arith.constant 0 : i32
    %c0_i32_2 = arith.constant 0 : i32
    return %c0_i32, %c0_i32_0, %c0_i32_1 : i32, i32, i32
  }
  func.func @transform_6(%arg0: i32, %arg1: i32, %arg2: memref<1xi32, #tpu.memory_space<smem>>, %arg3: memref<1xi32, #tpu.memory_space<smem>>) -> (i32, i32) {
    %c0_i32 = arith.constant 0 : i32
    %c0_i32_0 = arith.constant 0 : i32
    return %c0_i32, %arg0 : i32, i32
  }
}

</mosaic_0001>

<llo_original>
// kernel: tpu_custom_call.1
$region0: #{tpu_custom_call.1}
  #allocation0 [shape = 'u32[]', space=smem, size = 0x4, offset = 0x4, fixed_abs, tag = 'smem constant byte address 0x4 - core index']
  #allocation1 [shape = 'u32[144,128]{1,0:T(1,128)}', space=vmem, size = 0x12000, scoped, tag = 'internal scratch']
  #allocation2 [shape = 'f32[33,16]{1,0:T(8,128)}', space=vmem, size = 0x5000, scoped, tag = 'scratch operand']
  #allocation3 [shape = 's32[1]{0}', space=sflag, size = 0x4, scoped, tag = 'scoped memory for tpu_custom_call.1']
  #allocation4 [shape = 's32[1]{0:T(128)S(6)}', space=smem, size = 0x200, scoped, tag = 'prefetched SMEM operand 0']
  #allocation5 [shape = 's32[1]{0:T(128)S(6)}', space=smem, size = 0x200, scoped, tag = 'prefetched SMEM operand 1']
  %s0 = inlined_call_operand.<no memory space> [shape: s32[1], index: 0, kind: input, shape index: {}]
  %s1 = inlined_call_operand.<no memory space> [shape: s32[1], index: 1, kind: input, shape index: {}]
  %s2 = inlined_call_operand.vmem [shape: s32[128,1], index: 2, kind: input, shape index: {}]
  %s3 = inlined_call_operand.vmem [shape: bf16[33,128], index: 3, kind: input, shape index: {}]
  %s4 = inlined_call_operand.vmem [shape: bf16[38,16], index: 4, kind: input, shape index: {}]
  %s5 = inlined_call_operand.vmem [shape: bf16[32,38], index: 5, kind: input, shape index: {}]
  %s6 = inlined_call_operand.vmem [shape: bf16[3,32,32], index: 6, kind: input, shape index: {}]
  %s7 = inlined_call_operand.vmem [shape: f32[3,32,1], index: 7, kind: input, shape index: {}]
  %s8 = inlined_call_operand.vmem [shape: f32[32,16], index: 8, kind: output, shape index: {}]
  %s9 = sld [smem:[#allocation0]]
  $region46: #{tpu_custom_call.1} parent=0
    _
  %s11 = ssub.s32 1, %s9
  %s12 = scalar_select 0, %s11, %s9
  %13 = sst [smem:[#allocation4]] %s0
  %14 = sst [smem:[#allocation5]] %s1
  // Predicated region
  $region2: #{tpu_custom_call.1} parent=0 // pred_check
    _
  $region3: #{tpu_custom_call.1} parent=0 // pred_check_branch
    %16 = sbr.rel (0) target = $region5
  $region4: #{tpu_custom_call.1} parent=0 // pred_region
    %s17 = sld [smem:[#allocation4]]
    %s18 = sld [smem:[#allocation5]]
    %s19 = ssub.s32 %s18, 1
    %p20 = scmp.gt.s32.totalorder %s19, 0
    %s21 = scalar_select %p20, %s19, 0
    %p22 = scmp.lt.s32.totalorder 0, %s21
    %s23 = scalar_select %p22, 0, %s21
    %s24 = sadd.s32 %s17, %s23
    %s25 = smul.u32 16, %s24
    %p26 = scmp.lt.s32.totalorder %s25, 15
    %s27 = scalar_select %p26, %s25, 15
    %s28 = smul.addr %s27, 8
    %s29 = scalar_lea.vmem %s2, %s28
    %s30 = sld [smem:[#allocation4]]
    %s31 = sld [smem:[#allocation5]]
    %s32 = ssub.s32 %s31, 1
    %p33 = scmp.gt.s32.totalorder %s32, 0
    %s34 = scalar_select %p33, %s32, 0
    %p35 = scmp.lt.s32.totalorder 0, %s34
    %s36 = scalar_select %p35, 0, %s34
    %s37 = sadd.s32 %s30, %s36
    %s38 = smul.u32 16, %s37
  $region5: #{tpu_custom_call.1} parent=0 // pred_fallthru
    _
  // Predicated region
  $region6: #{tpu_custom_call.1} parent=0 // pred_check
    _
  $region7: #{tpu_custom_call.1} parent=0 // pred_check_branch
    %40 = sbr.rel (0) target = $region9
  $region8: #{tpu_custom_call.1} parent=0 // pred_region
    %s41 = sld [smem:[#allocation4]]
    %s42 = sld [smem:[#allocation5]]
    %s43 = ssub.s32 %s42, 1
    %p44 = scmp.gt.s32.totalorder %s43, 0
    %s45 = scalar_select %p44, %s43, 0
    %p46 = scmp.lt.s32.totalorder 0, %s45
    %s47 = scalar_select %p46, 0, %s45
    %s48 = sadd.s32 %s41, %s47
    %p49 = scmp.lt.s32.totalorder %s48, 0
    %s50 = scalar_select %p49, %s48, 0
    %s51 = smul.addr %s50, 4
    %s52 = scalar_lea.vmem %s3, %s51
    %s53 = sld [smem:[#allocation4]]
    %s54 = sld [smem:[#allocation5]]
    %s55 = ssub.s32 %s54, 1
    %p56 = scmp.gt.s32.totalorder %s55, 0
    %s57 = scalar_select %p56, %s55, 0
    %p58 = scmp.lt.s32.totalorder 0, %s57
    %s59 = scalar_select %p58, 0, %s57
    %s60 = sadd.s32 %s53, %s59
  $region9: #{tpu_custom_call.1} parent=0 // pred_fallthru
    _
  // Predicated region
  $region10: #{tpu_custom_call.1} parent=0 // pred_check
    _
  $region11: #{tpu_custom_call.1} parent=0 // pred_check_branch
    %62 = sbr.rel (0) target = $region13
  $region12: #{tpu_custom_call.1} parent=0 // pred_region
    _
  $region13: #{tpu_custom_call.1} parent=0 // pred_fallthru
    _
  // Predicated region
  $region14: #{tpu_custom_call.1} parent=0 // pred_check
    _
  $region15: #{tpu_custom_call.1} parent=0 // pred_check_branch
    %64 = sbr.rel (0) target = $region17
  $region16: #{tpu_custom_call.1} parent=0 // pred_region
    _
  $region17: #{tpu_custom_call.1} parent=0 // pred_fallthru
    _
  // Predicated region
  $region18: #{tpu_custom_call.1} parent=0 // pred_check
    _
  $region19: #{tpu_custom_call.1} parent=0 // pred_check_branch
    %66 = sbr.rel (0) target = $region21
  $region20: #{tpu_custom_call.1} parent=0 // pred_region
    _
  $region21: #{tpu_custom_call.1} parent=0 // pred_fallthru
    _
  // Predicated region
  $region22: #{tpu_custom_call.1} parent=0 // pred_check
    _
  $region23: #{tpu_custom_call.1} parent=0 // pred_check_branch
    %68 = sbr.rel (0) target = $region25
  $region24: #{tpu_custom_call.1} parent=0 // pred_region
    _
  $region25: #{tpu_custom_call.1} parent=0 // pred_fallthru
    _
  %s69 = sld [smem:[#allocation4]]
  %s70 = sld [smem:[#allocation5]]
  %s71 = ssub.s32 %s70, 1
  %p72 = scmp.gt.s32.totalorder %s71, 0
  %s73 = scalar_select %p72, %s71, 0
  %p74 = scmp.lt.s32.totalorder 0, %s73
  %s75 = scalar_select %p74, 0, %s73
  %s76 = sadd.s32 %s69, %s75
  %s77 = smul.u32 16, %s76
  %p78 = scmp.lt.s32.totalorder %s77, 15
  %s79 = scalar_select %p78, %s77, 15
  %s80 = smul.addr %s79, 8
  %s81 = scalar_lea.vmem %s2, %s80
  %s82 = sld [smem:[#allocation4]]
  %s83 = sld [smem:[#allocation5]]
  %s84 = ssub.s32 %s83, 1
  %p85 = scmp.gt.s32.totalorder %s84, 0
  %s86 = scalar_select %p85, %s84, 0
  %p87 = scmp.lt.s32.totalorder 0, %s86
  %s88 = scalar_select %p87, 0, %s86
  %s89 = sadd.s32 %s82, %s88
  %p90 = scmp.lt.s32.totalorder %s89, 0
  %s91 = scalar_select %p90, %s89, 0
  %s92 = smul.addr %s91, 4
  %s93 = scalar_lea.vmem %s3, %s92
  %s94 = sld [smem:[#allocation4]]
  %s95 = sld [smem:[#allocation5]]
  %s96 = ssub.s32 %s95, 1
  %p97 = scmp.gt.s32.totalorder %s96, 0
  %s98 = scalar_select %p97, %s96, 0
  %p99 = scmp.lt.s32.totalorder 0, %s98
  %s100 = scalar_select %p99, 0, %s98
  %s101 = sadd.s32 %s94, %s100
  %s102 = smul.u32 16, %s101
  %p103 = scmp.lt.s32.totalorder %s102, 15
  %s104 = scalar_select %p103, %s102, 15
  %s105 = smul.addr %s104, 8
  %s106 = scalar_lea.vmem %s2, %s105
  %s107 = sld [smem:[#allocation4]]
  %s108 = sld [smem:[#allocation5]]
  %s109 = ssub.s32 %s108, 1
  %p110 = scmp.gt.s32.totalorder %s109, 0
  %s111 = scalar_select %p110, %s109, 0
  %p112 = scmp.lt.s32.totalorder 0, %s111
  %s113 = scalar_select %p112, 0, %s111
  %s114 = sadd.s32 %s107, %s113
  %s115 = smul.u32 16, %s114
  %s116 = sld [smem:[#allocation4]]
  %s117 = sld [smem:[#allocation5]]
  %s118 = ssub.s32 %s117, 1
  %p119 = scmp.gt.s32.totalorder %s118, 0
  %s120 = scalar_select %p119, %s118, 0
  %p121 = scmp.lt.s32.totalorder 0, %s120
  %s122 = scalar_select %p121, 0, %s120
  %s123 = sadd.s32 %s116, %s122
  %p124 = scmp.lt.s32.totalorder %s123, 0
  %s125 = scalar_select %p124, %s123, 0
  %s126 = smul.addr %s125, 4
  %s127 = scalar_lea.vmem %s3, %s126
  %s128 = sld [smem:[#allocation4]]
  %s129 = sld [smem:[#allocation5]]
  %s130 = ssub.s32 %s129, 1
  %p131 = scmp.gt.s32.totalorder %s130, 0
  %s132 = scalar_select %p131, %s130, 0
  %p133 = scmp.lt.s32.totalorder 0, %s132
  %s134 = scalar_select %p133, 0, %s132
  %s135 = sadd.s32 %s128, %s134
  %p137 = scmp.eq.s32.totalorder 0, 0
  // Predicated region
  $region26: #{tpu_custom_call.1} parent=0 // pred_check
    %p138 = pneg %p137
  $region27: #{tpu_custom_call.1} parent=0 // pred_check_branch
    %140 = sbr.rel (%p138) target = $region29
  $region28: #{tpu_custom_call.1} parent=0 // pred_region
    %vm141 = vcmask 130048
    %142 = vst.msk [vmem:[#allocation2] sm:$0xff] %vm141, 0.0
    %143 = vst.msk [vmem:[#allocation2 + $0x8] sm:$0xff] %vm141, 0.0
    %144 = vst.msk [vmem:[#allocation2 + $0x10] sm:$0xff] %vm141, 0.0
    %145 = vst.msk [vmem:[#allocation2 + $0x18] sm:$0xff] %vm141, 0.0
    %vm146 = vcmask 122880
    %147 = vst.msk [vmem:[#allocation2 + $0x20] sm:$0x1] %vm146, 0.0
  $region29: #{tpu_custom_call.1} parent=0 // pred_fallthru
    _
  %s148 = sld [smem:[#allocation5]]
  %p149 = scmp.lt.s32.totalorder 0, %s148
  // Predicated region
  $region30: #{tpu_custom_call.1} parent=0 // pred_check
    %p150 = pneg %p149
  $region31: #{tpu_custom_call.1} parent=0 // pred_check_branch
    %152 = sbr.rel (%p150) target = $region33
  $region32: #{tpu_custom_call.1} parent=0 // pred_region
    %v153 = vld [vmem:[%s106] sm:$0xff]
    %v154 = vld [vmem:[%s106 + $0x8] sm:$0xff]
    %v155 = vld [vmem:[%s106 + $0x10] sm:$0xff]
    %v156 = vld [vmem:[%s106 + $0x18] sm:$0xff]
    %v157 = vld [vmem:[%s106 + $0x20] sm:$0xff]
    %v158 = vld [vmem:[%s106 + $0x28] sm:$0xff]
    %v159 = vld [vmem:[%s106 + $0x30] sm:$0xff]
    %v160 = vld [vmem:[%s106 + $0x38] sm:$0xff]
    %v161 = vld [vmem:[%s106 + $0x40] sm:$0xff]
    %v162 = vld [vmem:[%s106 + $0x48] sm:$0xff]
    %v163 = vld [vmem:[%s106 + $0x50] sm:$0xff]
    %v164 = vld [vmem:[%s106 + $0x58] sm:$0xff]
    %v165 = vld [vmem:[%s106 + $0x60] sm:$0xff]
    %v166 = vld [vmem:[%s106 + $0x68] sm:$0xff]
    %v167 = vld [vmem:[%s106 + $0x70] sm:$0xff]
    %v168 = vld [vmem:[%s106 + $0x78] sm:$0xff]
    %s169 = smul.u32 0, 16
    %v170 = vstv %s169
    %v171 = vsub.s32 %v153, %v170
    %v172 = vsub.s32 %v154, %v170
    %v173 = vsub.s32 %v155, %v170
    %v174 = vsub.s32 %v156, %v170
    %v175 = vsub.s32 %v157, %v170
    %v176 = vsub.s32 %v158, %v170
    %v177 = vsub.s32 %v159, %v170
    %v178 = vsub.s32 %v160, %v170
    %v179 = vsub.s32 %v161, %v170
    %v180 = vsub.s32 %v162, %v170
    %v181 = vsub.s32 %v163, %v170
    %v182 = vsub.s32 %v164, %v170
    %v183 = vsub.s32 %v165, %v170
    %v184 = vsub.s32 %v166, %v170
    %v185 = vsub.s32 %v167, %v170
    %v186 = vsub.s32 %v168, %v170
    %v187 = vlaneseq
    %v188 = vand.u32 %v187, 127
    %189 = vset.pattern.permute.xlu0 0
    %190 = vperm.xlu0 %189, %v171
    %v191 = vpop.permute.xlu0 %190
    %192 = vset.pattern.permute.xlu0 0
    %193 = vperm.xlu0 %192, %v172
    %v194 = vpop.permute.xlu0 %193
    %195 = vset.pattern.permute.xlu0 0
    %196 = vperm.xlu0 %195, %v173
    %v197 = vpop.permute.xlu0 %196
    %198 = vset.pattern.permute.xlu0 0
    %199 = vperm.xlu0 %198, %v174
    %v200 = vpop.permute.xlu0 %199
    %201 = vset.pattern.permute.xlu0 0
    %202 = vperm.xlu0 %201, %v175
    %v203 = vpop.permute.xlu0 %202
    %204 = vset.pattern.permute.xlu0 0
    %205 = vperm.xlu0 %204, %v176
    %v206 = vpop.permute.xlu0 %205
    %207 = vset.pattern.permute.xlu0 0
    %208 = vperm.xlu0 %207, %v177
    %v209 = vpop.permute.xlu0 %208
    %210 = vset.pattern.permute.xlu0 0
    %211 = vperm.xlu0 %210, %v178
    %v212 = vpop.permute.xlu0 %211
    %213 = vset.pattern.permute.xlu0 0
    %214 = vperm.xlu0 %213, %v179
    %v215 = vpop.permute.xlu0 %214
    %216 = vset.pattern.permute.xlu0 0
    %217 = vperm.xlu0 %216, %v180
    %v218 = vpop.permute.xlu0 %217
    %219 = vset.pattern.permute.xlu0 0
    %220 = vperm.xlu0 %219, %v181
    %v221 = vpop.permute.xlu0 %220
    %222 = vset.pattern.permute.xlu0 0
    %223 = vperm.xlu0 %222, %v182
    %v224 = vpop.permute.xlu0 %223
    %225 = vset.pattern.permute.xlu0 0
    %226 = vperm.xlu0 %225, %v183
    %v227 = vpop.permute.xlu0 %226
    %228 = vset.pattern.permute.xlu0 0
    %229 = vperm.xlu0 %228, %v184
    %v230 = vpop.permute.xlu0 %229
    %231 = vset.pattern.permute.xlu0 0
    %232 = vperm.xlu0 %231, %v185
    %v233 = vpop.permute.xlu0 %232
    %234 = vset.pattern.permute.xlu0 0
    %235 = vperm.xlu0 %234, %v186
    %v236 = vpop.permute.xlu0 %235
    %vm237 = vcmp.eq.s32.totalorder %v191, %v188
    %vm238 = vcmp.eq.s32.totalorder %v194, %v188
    %vm239 = vcmp.eq.s32.totalorder %v197, %v188
    %vm240 = vcmp.eq.s32.totalorder %v200, %v188
    %vm241 = vcmp.eq.s32.totalorder %v203, %v188
    %vm242 = vcmp.eq.s32.totalorder %v206, %v188
    %vm243 = vcmp.eq.s32.totalorder %v209, %v188
    %vm244 = vcmp.eq.s32.totalorder %v212, %v188
    %vm245 = vcmp.eq.s32.totalorder %v215, %v188
    %vm246 = vcmp.eq.s32.totalorder %v218, %v188
    %vm247 = vcmp.eq.s32.totalorder %v221, %v188
    %vm248 = vcmp.eq.s32.totalorder %v224, %v188
    %vm249 = vcmp.eq.s32.totalorder %v227, %v188
    %vm250 = vcmp.eq.s32.totalorder %v230, %v188
    %vm251 = vcmp.eq.s32.totalorder %v233, %v188
    %vm252 = vcmp.eq.s32.totalorder %v236, %v188
    %v253 = vsel %vm237, 1, 0
    %v254 = vsel %vm238, 1, 0
    %v255 = vsel %vm239, 1, 0
    %v256 = vsel %vm240, 1, 0
    %v257 = vsel %vm241, 1, 0
    %v258 = vsel %vm242, 1, 0
    %v259 = vsel %vm243, 1, 0
    %v260 = vsel %vm244, 1, 0
    %v261 = vsel %vm245, 1, 0
    %v262 = vsel %vm246, 1, 0
    %v263 = vsel %vm247, 1, 0
    %v264 = vsel %vm248, 1, 0
    %v265 = vsel %vm249, 1, 0
    %v266 = vsel %vm250, 1, 0
    %v267 = vsel %vm251, 1, 0
    %v268 = vsel %vm252, 1, 0
    %v269 = vcvt.s32.f32 %v253
    %v270 = vcvt.s32.f32 %v254
    %v271 = vcvt.s32.f32 %v255
    %v272 = vcvt.s32.f32 %v256
    %v273 = vcvt.s32.f32 %v257
    %v274 = vcvt.s32.f32 %v258
    %v275 = vcvt.s32.f32 %v259
    %v276 = vcvt.s32.f32 %v260
    %v277 = vcvt.s32.f32 %v261
    %v278 = vcvt.s32.f32 %v262
    %v279 = vcvt.s32.f32 %v263
    %v280 = vcvt.s32.f32 %v264
    %v281 = vcvt.s32.f32 %v265
    %v282 = vcvt.s32.f32 %v266
    %v283 = vcvt.s32.f32 %v267
    %v284 = vcvt.s32.f32 %v268
    %v285 = vpack.c.bf16 %v270, %v269
    %v286 = vpack.c.bf16 %v272, %v271
    %v287 = vpack.c.bf16 %v274, %v273
    %v288 = vpack.c.bf16 %v276, %v275
    %v289 = vpack.c.bf16 %v278, %v277
    %v290 = vpack.c.bf16 %v280, %v279
    %v291 = vpack.c.bf16 %v282, %v281
    %v292 = vpack.c.bf16 %v284, %v283
    %v293 = vld [vmem:[#allocation2] sm:$0xff]
    %v294 = vld [vmem:[#allocation2 + $0x8] sm:$0xff]
    %v295 = vld [vmem:[#allocation2 + $0x10] sm:$0xff]
    %v296 = vld [vmem:[#allocation2 + $0x18] sm:$0xff]
    %v297 = vld [vmem:[#allocation2 + $0x20] sm:$0x1]
    %v298 = vld [vmem:[%s127] sm:$0xf]
    %v299 = vld [vmem:[%s127 + $0x4] sm:$0xf]
    %v300 = vld [vmem:[%s127 + $0x8] sm:$0xf]
    %v301 = vld [vmem:[%s127 + $0xc] sm:$0xf]
    %v302 = vld [vmem:[%s127 + $0x10] sm:$0x1]
    %v308 = vunpack.c.l.b16 %v298
    %v309 = vunpack.c.l.b16 %v299
    %v310 = vunpack.c.l.b16 %v300
    %v311 = vunpack.c.l.b16 %v301
    %v312 = vunpack.c.l.b16 %v302
    %v313 = vpack.c.b16 %v309, %v308
    %v314 = vpack.c.b16 %v311, %v310
    %v315 = vpack.c.b16 %v312, %v312
    %319 = vmatprep.subr.bf16.mxu0 0
    %320 = vmatpush1.bf16.msra.mxu0 %v285
    %321 = vmatprep.subr.bf16.mxu0 0
    %322 = vmatpush1.bf16.msra.mxu0 %v286
    %323 = vmatprep.subr.bf16.mxu0 0
    %324 = vmatpush1.bf16.msra.mxu0 %v287
    %325 = vmatprep.subr.bf16.mxu0 0
    %326 = vmatpush1.bf16.msra.mxu0 %v288
    %327 = vmatprep.subr.bf16.mxu0 0
    %328 = vmatpush1.bf16.msra.mxu0 %v289
    %329 = vmatprep.subr.bf16.mxu0 0
    %330 = vmatpush1.bf16.msra.mxu0 %v290
    %331 = vmatprep.subr.bf16.mxu0 0
    %332 = vmatpush1.bf16.msra.mxu0 %v291
    %333 = vmatprep.subr.bf16.mxu0 0
    %334 = vmatpush1.bf16.msra.mxu0 %v292
    %335 = vmatprep.subr.bf16.mxu0 0
    %336 = vmatpush1.bf16.msra.mxu0 0
    %337 = vmatprep.subr.bf16.mxu0 0
    %338 = vmatpush1.bf16.msra.mxu0 0
    %339 = vmatprep.subr.bf16.mxu0 0
    %340 = vmatpush1.bf16.msra.mxu0 0
    %341 = vmatprep.subr.bf16.mxu0 0
    %342 = vmatpush1.bf16.msra.mxu0 0
    %343 = vmatprep.subr.bf16.mxu0 0
    %344 = vmatpush1.bf16.msra.mxu0 0
    %345 = vmatprep.subr.bf16.mxu0 0
    %346 = vmatpush1.bf16.msra.mxu0 0
    %347 = vmatprep.subr.bf16.mxu0 0
    %348 = vmatpush1.bf16.msra.mxu0 0
    %349 = vmatprep.subr.bf16.mxu0 0
    %350 = vmatpush1.bf16.msra.mxu0 0
    %351 = vmatprep.mubr.bf16.mxu0 0
    %352 = vmatmul.mubr.bf16.gmra.mrb[0].mxu0 %v313
    %v353 = vpop.f32.mrb[0].mxu0
    %v354 = vadd.f32 0.0, %v353
    %v355 = vpop.f32.mrb[0].mxu0
    %v356 = vpop.f32.mrb[0].mxu0
    %v357 = vadd.f32 0.0, %v356
    %v358 = vpop.f32.mrb[0].mxu0
    %359 = vmatprep.mubr.bf16.mxu0 0
    %360 = vmatmul.mubr.bf16.gmra.mrb[0].mxu0 %v314
    %v361 = vpop.f32.mrb[0].mxu0
    %v362 = vadd.f32 0.0, %v361
    %v363 = vpop.f32.mrb[0].mxu0
    %v364 = vpop.f32.mrb[0].mxu0
    %v365 = vadd.f32 0.0, %v364
    %v366 = vpop.f32.mrb[0].mxu0
    %367 = vmatprep.mubr.bf16.mxu0 0
    %368 = vmatmul.mubr.bf16.gmra.mrb[0].mxu0 %v315
    %v369 = vpop.f32.mrb[0].mxu0
    %v370 = vadd.f32 0.0, %v369
    %v371 = vpop.f32.mrb[0].mxu0
    %v372 = vpop.f32.mrb[0].mxu0
    %v373 = vpop.f32.mrb[0].mxu0
    %374 = vdwg.mxu0
    %v375 = vadd.f32 %v293, %v354
    %v376 = vadd.f32 %v294, %v357
    %v377 = vadd.f32 %v295, %v362
    %v378 = vadd.f32 %v296, %v365
    %v379 = vadd.f32 %v297, %v370
    %vm380 = vcmask 130048
    %381 = vst.msk [vmem:[#allocation2] sm:$0xff] %vm380, %v375
    %382 = vst.msk [vmem:[#allocation2 + $0x8] sm:$0xff] %vm380, %v376
    %383 = vst.msk [vmem:[#allocation2 + $0x10] sm:$0xff] %vm380, %v377
    %384 = vst.msk [vmem:[#allocation2 + $0x18] sm:$0xff] %vm380, %v378
    %vm385 = vcmask 122880
    %386 = vst.msk [vmem:[#allocation2 + $0x20] sm:$0x1] %vm385, %v379
  $region33: #{tpu_custom_call.1} parent=0 // pred_fallthru
    _
  // Predicated region
  $region34: #{tpu_custom_call.1} parent=0 // pred_check
    %p387 = pneg %p137
  $region35: #{tpu_custom_call.1} parent=0 // pred_check_branch
    %389 = sbr.rel (%p387) target = $region37
  $region36: #{tpu_custom_call.1} parent=0 // pred_region
    %v390 = vld [vmem:[#allocation2] sm:$0xff]
    %v391 = vld [vmem:[#allocation2 + $0x8] sm:$0xff]
    %v392 = vld [vmem:[#allocation2 + $0x10] sm:$0xff]
    %v393 = vld [vmem:[#allocation2 + $0x18] sm:$0xff]
    %v394 = vld [vmem:[#allocation2 + $0x20] sm:$0x1]
    %v395 = vmax.f32 %v394, 1.0
    %v396 = vrcp.pop %v395
    %v397 = vlaneseq
    %v398 = vshrl.u32 %v397, 7
    %v399 = vsub.s32 0, %v398
    %v400 = vrot.slane %v396, %v399
    %v401 = vmul.f32 %v390, %v400
    %v402 = vmul.f32 %v391, %v400
    %v403 = vmul.f32 %v392, %v400
    %v404 = vmul.f32 %v393, %v400
    %v405 = vpack.c.bf16 %v402, %v401
    %v406 = vpack.c.bf16 %v404, %v403
    %v407 = vld [vmem:[%s5] sm:$0xf]
    %v408 = vld [vmem:[%s5 + $0x4] sm:$0xf]
    %v409 = vld [vmem:[%s5 + $0x8] sm:$0xf]
    %v410 = vld [vmem:[%s5 + $0xc] sm:$0xf]
    %v411 = vld [vmem:[%s4] sm:$0xf]
    %v412 = vld [vmem:[%s4 + $0x4] sm:$0xf]
    %v413 = vld [vmem:[%s4 + $0x8] sm:$0xf]
    %v414 = vld [vmem:[%s4 + $0xc] sm:$0xf]
    %v415 = vld [vmem:[%s4 + $0x10] sm:$0x7]
    %v416 = vld [vmem:[%s6] sm:$0xf]
    %v417 = vld [vmem:[%s6 + $0x4] sm:$0xf]
    %v418 = vld [vmem:[%s6 + $0x8] sm:$0xf]
    %v419 = vld [vmem:[%s6 + $0xc] sm:$0xf]
    %v424 = vunpack.c.l.b16 %v416
    %v425 = vunpack.c.l.b16 %v417
    %v426 = vunpack.c.l.b16 %v418
    %v427 = vunpack.c.l.b16 %v419
    %v428 = vpack.c.b16 %v425, %v424
    %v429 = vpack.c.b16 %v427, %v426
    %vm430 = vcmask 261120
    %v432 = vsel %vm430, %v428, 0
    %v435 = vsel %vm430, %v429, 0
    %437 = vmatprep.subr.bf16.mxu0 0
    %438 = vmatpush1.bf16.msra.mxu0 %v405
    %439 = vmatprep.subr.bf16.mxu0 0
    %440 = vmatpush1.bf16.msra.mxu0 %v406
    %441 = vmatprep.subr.bf16.mxu0 0
    %442 = vmatpush1.bf16.msra.mxu0 0
    %443 = vmatprep.subr.bf16.mxu0 0
    %444 = vmatpush1.bf16.msra.mxu0 0
    %445 = vmatprep.subr.bf16.mxu0 0
    %446 = vmatpush1.bf16.msra.mxu0 0
    %447 = vmatprep.subr.bf16.mxu0 0
    %448 = vmatpush1.bf16.msra.mxu0 0
    %449 = vmatprep.subr.bf16.mxu0 0
    %450 = vmatpush1.bf16.msra.mxu0 0
    %451 = vmatprep.subr.bf16.mxu0 0
    %452 = vmatpush1.bf16.msra.mxu0 0
    %453 = vmatprep.subr.bf16.mxu0 0
    %454 = vmatpush1.bf16.msra.mxu0 0
    %455 = vmatprep.subr.bf16.mxu0 0
    %456 = vmatpush1.bf16.msra.mxu0 0
    %457 = vmatprep.subr.bf16.mxu0 0
    %458 = vmatpush1.bf16.msra.mxu0 0
    %459 = vmatprep.subr.bf16.mxu0 0
    %460 = vmatpush1.bf16.msra.mxu0 0
    %461 = vmatprep.subr.bf16.mxu0 0
    %462 = vmatpush1.bf16.msra.mxu0 0
    %463 = vmatprep.subr.bf16.mxu0 0
    %464 = vmatpush1.bf16.msra.mxu0 0
    %465 = vmatprep.subr.bf16.mxu0 0
    %466 = vmatpush1.bf16.msra.mxu0 0
    %467 = vmatprep.subr.bf16.mxu0 0
    %468 = vmatpush1.bf16.msra.mxu0 0
    %469 = vmatprep.mubr.bf16.mxu0 0
    %470 = vmatmul.mubr.bf16.gmra.mrb[0].mxu0 %v432
    %v471 = vpop.f32.mrb[0].mxu0
    %v472 = vadd.f32 0.0, %v471
    %v473 = vpop.f32.mrb[0].mxu0
    %v474 = vpop.f32.mrb[0].mxu0
    %v475 = vadd.f32 0.0, %v474
    %v476 = vpop.f32.mrb[0].mxu0
    %477 = vmatprep.mubr.bf16.mxu0 0
    %478 = vmatmul.mubr.bf16.gmra.mrb[0].mxu0 %v435
    %v479 = vpop.f32.mrb[0].mxu0
    %v480 = vadd.f32 0.0, %v479
    %v481 = vpop.f32.mrb[0].mxu0
    %v482 = vpop.f32.mrb[0].mxu0
    %v483 = vadd.f32 0.0, %v482
    %v484 = vpop.f32.mrb[0].mxu0
    %485 = vdwg.mxu0
    %v490 = vunpack.c.l.b16 %v407
    %v491 = vunpack.c.l.b16 %v408
    %v492 = vunpack.c.l.b16 %v409
    %v493 = vunpack.c.l.b16 %v410
    %v494 = vpack.c.b16 %v491, %v490
    %v495 = vpack.c.b16 %v493, %v492
    %v501 = vunpack.c.l.b16 %v411
    %v502 = vunpack.c.l.b16 %v412
    %v503 = vunpack.c.l.b16 %v413
    %v504 = vunpack.c.l.b16 %v414
    %v505 = vunpack.c.l.b16 %v415
    %v506 = vpack.c.b16 %v502, %v501
    %v507 = vpack.c.b16 %v504, %v503
    %v508 = vpack.c.b16 %v505, %v505
    %vm511 = vcmask 310272
    %v513 = vsel %vm511, %v494, 0
    %v516 = vsel %vm511, %v495, 0
    %vm518 = vcmask 1042432
    %v520 = vsel %vm518, %v508, 0
    %522 = vmatprep.subr.bf16.mxu0 0
    %523 = vmatpush1.bf16.msra.mxu0 %v506
    %524 = vmatprep.subr.bf16.mxu0 0
    %525 = vmatpush1.bf16.msra.mxu0 %v507
    %526 = vmatprep.subr.bf16.mxu0 0
    %527 = vmatpush1.bf16.msra.mxu0 %v520
    %528 = vmatprep.subr.bf16.mxu0 0
    %529 = vmatpush1.bf16.msra.mxu0 0
    %530 = vmatprep.subr.bf16.mxu0 0
    %531 = vmatpush1.bf16.msra.mxu0 0
    %532 = vmatprep.subr.bf16.mxu0 0
    %533 = vmatpush1.bf16.msra.mxu0 0
    %534 = vmatprep.subr.bf16.mxu0 0
    %535 = vmatpush1.bf16.msra.mxu0 0
    %536 = vmatprep.subr.bf16.mxu0 0
    %537 = vmatpush1.bf16.msra.mxu0 0
    %538 = vmatprep.subr.bf16.mxu0 0
    %539 = vmatpush1.bf16.msra.mxu0 0
    %540 = vmatprep.subr.bf16.mxu0 0
    %541 = vmatpush1.bf16.msra.mxu0 0
    %542 = vmatprep.subr.bf16.mxu0 0
    %543 = vmatpush1.bf16.msra.mxu0 0
    %544 = vmatprep.subr.bf16.mxu0 0
    %545 = vmatpush1.bf16.msra.mxu0 0
    %546 = vmatprep.subr.bf16.mxu0 0
    %547 = vmatpush1.bf16.msra.mxu0 0
    %548 = vmatprep.subr.bf16.mxu0 0
    %549 = vmatpush1.bf16.msra.mxu0 0
    %550 = vmatprep.subr.bf16.mxu0 0
    %551 = vmatpush1.bf16.msra.mxu0 0
    %552 = vmatprep.subr.bf16.mxu0 0
    %553 = vmatpush1.bf16.msra.mxu0 0
    %554 = vmatprep.mubr.bf16.mxu0 0
    %555 = vmatmul.mubr.bf16.gmra.mrb[0].mxu0 %v513
    %v556 = vpop.f32.mrb[0].mxu0
    %v557 = vadd.f32 %v472, %v556
    %v558 = vpop.f32.mrb[0].mxu0
    %v559 = vpop.f32.mrb[0].mxu0
    %v560 = vadd.f32 %v475, %v559
    %v561 = vpop.f32.mrb[0].mxu0
    %562 = vmatprep.mubr.bf16.mxu0 0
    %563 = vmatmul.mubr.bf16.gmra.mrb[0].mxu0 %v516
    %v564 = vpop.f32.mrb[0].mxu0
    %v565 = vadd.f32 %v480, %v564
    %v566 = vpop.f32.mrb[0].mxu0
    %v567 = vpop.f32.mrb[0].mxu0
    %v568 = vadd.f32 %v483, %v567
    %v569 = vpop.f32.mrb[0].mxu0
    %570 = vdwg.mxu0
    %v571 = vld [vmem:[%s7] sm:$0xff]
    %v572 = vld [vmem:[%s7 + $0x8] sm:$0xff]
    %v573 = vld [vmem:[%s7 + $0x10] sm:$0xff]
    %v574 = vld [vmem:[%s7 + $0x18] sm:$0xff]
    %576 = vset.pattern.permute.xlu0 0
    %577 = vperm.xlu0 %576, %v571
    %v578 = vpop.permute.xlu0 %577
    %581 = vset.pattern.permute.xlu0 0
    %582 = vperm.xlu0 %581, %v572
    %v583 = vpop.permute.xlu0 %582
    %586 = vset.pattern.permute.xlu0 0
    %587 = vperm.xlu0 %586, %v573
    %v588 = vpop.permute.xlu0 %587
    %591 = vset.pattern.permute.xlu0 0
    %592 = vperm.xlu0 %591, %v574
    %v593 = vpop.permute.xlu0 %592
    %v595 = vadd.f32 %v557, %v578
    %v596 = vadd.f32 %v560, %v583
    %v597 = vadd.f32 %v565, %v588
    %v598 = vadd.f32 %v568, %v593
    %v599 = vxor.u32 %v595, 2147483648
    %v600 = vxor.u32 %v596, 2147483648
    %v601 = vxor.u32 %v597, 2147483648
    %v602 = vxor.u32 %v598, 2147483648
    %v603 = vmul.f32 %v599, 1.442695
    %v604 = vpow.pop %v603
    %v605 = vmul.f32 %v600, 1.442695
    %v606 = vpow.pop %v605
    %v607 = vmul.f32 %v601, 1.442695
    %v608 = vpow.pop %v607
    %v609 = vmul.f32 %v602, 1.442695
    %v610 = vpow.pop %v609
    %v611 = vadd.f32 %v604, 1.0
    %v612 = vadd.f32 %v606, 1.0
    %v613 = vadd.f32 %v608, 1.0
    %v614 = vadd.f32 %v610, 1.0
    %v615 = vrcp.pop %v611
    %v616 = vmul.f32 1.0, %v615
    %v617 = vrcp.pop %v612
    %v618 = vmul.f32 1.0, %v617
    %v619 = vrcp.pop %v613
    %v620 = vmul.f32 1.0, %v619
    %v621 = vrcp.pop %v614
    %v622 = vmul.f32 1.0, %v621
    %v623 = vmul.f32 %v595, %v616
    %v624 = vmul.f32 %v596, %v618
    %v625 = vmul.f32 %v597, %v620
    %v626 = vmul.f32 %v598, %v622
    %s627 = scalar_lea.vmem %s6, 16
    %v628 = vld [vmem:[%s627] sm:$0xf]
    %v629 = vld [vmem:[%s627 + $0x4] sm:$0xf]
    %v630 = vld [vmem:[%s627 + $0x8] sm:$0xf]
    %v631 = vld [vmem:[%s627 + $0xc] sm:$0xf]
    %v632 = vpack.c.bf16 %v624, %v623
    %v633 = vpack.c.bf16 %v626, %v625
    %s634 = scalar_lea.vmem %s7, 32
    %v635 = vld [vmem:[%s634] sm:$0xff]
    %v636 = vld [vmem:[%s634 + $0x8] sm:$0xff]
    %v637 = vld [vmem:[%s634 + $0x10] sm:$0xff]
    %v638 = vld [vmem:[%s634 + $0x18] sm:$0xff]
    %640 = vset.pattern.permute.xlu0 0
    %641 = vperm.xlu0 %640, %v635
    %v642 = vpop.permute.xlu0 %641
    %645 = vset.pattern.permute.xlu0 0
    %646 = vperm.xlu0 %645, %v636
    %v647 = vpop.permute.xlu0 %646
    %650 = vset.pattern.permute.xlu0 0
    %651 = vperm.xlu0 %650, %v637
    %v652 = vpop.permute.xlu0 %651
    %655 = vset.pattern.permute.xlu0 0
    %656 = vperm.xlu0 %655, %v638
    %v657 = vpop.permute.xlu0 %656
    %v663 = vunpack.c.l.b16 %v628
    %v664 = vunpack.c.l.b16 %v629
    %v665 = vunpack.c.l.b16 %v630
    %v666 = vunpack.c.l.b16 %v631
    %v667 = vpack.c.b16 %v664, %v663
    %v668 = vpack.c.b16 %v666, %v665
    %v670 = vsel %vm430, %v667, 0
    %v673 = vsel %vm430, %v668, 0
    %675 = vmatprep.subr.bf16.mxu0 0
    %676 = vmatpush1.bf16.msra.mxu0 %v632
    %677 = vmatprep.subr.bf16.mxu0 0
    %678 = vmatpush1.bf16.msra.mxu0 %v633
    %679 = vmatprep.subr.bf16.mxu0 0
    %680 = vmatpush1.bf16.msra.mxu0 0
    %681 = vmatprep.subr.bf16.mxu0 0
    %682 = vmatpush1.bf16.msra.mxu0 0
    %683 = vmatprep.subr.bf16.mxu0 0
    %684 = vmatpush1.bf16.msra.mxu0 0
    %685 = vmatprep.subr.bf16.mxu0 0
    %686 = vmatpush1.bf16.msra.mxu0 0
    %687 = vmatprep.subr.bf16.mxu0 0
    %688 = vmatpush1.bf16.msra.mxu0 0
    %689 = vmatprep.subr.bf16.mxu0 0
    %690 = vmatpush1.bf16.msra.mxu0 0
    %691 = vmatprep.subr.bf16.mxu0 0
    %692 = vmatpush1.bf16.msra.mxu0 0
    %693 = vmatprep.subr.bf16.mxu0 0
    %694 = vmatpush1.bf16.msra.mxu0 0
    %695 = vmatprep.subr.bf16.mxu0 0
    %696 = vmatpush1.bf16.msra.mxu0 0
    %697 = vmatprep.subr.bf16.mxu0 0
    %698 = vmatpush1.bf16.msra.mxu0 0
    %699 = vmatprep.subr.bf16.mxu0 0
    %700 = vmatpush1.bf16.msra.mxu0 0
    %701 = vmatprep.subr.bf16.mxu0 0
    %702 = vmatpush1.bf16.msra.mxu0 0
    %703 = vmatprep.subr.bf16.mxu0 0
    %704 = vmatpush1.bf16.msra.mxu0 0
    %705 = vmatprep.subr.bf16.mxu0 0
    %706 = vmatpush1.bf16.msra.mxu0 0
    %707 = vmatprep.mubr.bf16.mxu0 0
    %708 = vmatmul.mubr.bf16.gmra.mrb[0].mxu0 %v670
    %v709 = vpop.f32.mrb[0].mxu0
    %v710 = vadd.f32 %v642, %v709
    %v711 = vpop.f32.mrb[0].mxu0
    %v712 = vpop.f32.mrb[0].mxu0
    %v713 = vadd.f32 %v647, %v712
    %v714 = vpop.f32.mrb[0].mxu0
    %715 = vmatprep.mubr.bf16.mxu0 0
    %716 = vmatmul.mubr.bf16.gmra.mrb[0].mxu0 %v673
    %v717 = vpop.f32.mrb[0].mxu0
    %v718 = vadd.f32 %v652, %v717
    %v719 = vpop.f32.mrb[0].mxu0
    %v720 = vpop.f32.mrb[0].mxu0
    %v721 = vadd.f32 %v657, %v720
    %v722 = vpop.f32.mrb[0].mxu0
    %723 = vdwg.mxu0
    %v724 = vxor.u32 %v710, 2147483648
    %v725 = vxor.u32 %v713, 2147483648
    %v726 = vxor.u32 %v718, 2147483648
    %v727 = vxor.u32 %v721, 2147483648
    %v728 = vmul.f32 %v724, 1.442695
    %v729 = vpow.pop %v728
    %v730 = vmul.f32 %v725, 1.442695
    %v731 = vpow.pop %v730
    %v732 = vmul.f32 %v726, 1.442695
    %v733 = vpow.pop %v732
    %v734 = vmul.f32 %v727, 1.442695
    %v735 = vpow.pop %v734
    %v736 = vadd.f32 %v729, 1.0
    %v737 = vadd.f32 %v731, 1.0
    %v738 = vadd.f32 %v733, 1.0
    %v739 = vadd.f32 %v735, 1.0
    %v740 = vrcp.pop %v736
    %v741 = vmul.f32 1.0, %v740
    %v742 = vrcp.pop %v737
    %v743 = vmul.f32 1.0, %v742
    %v744 = vrcp.pop %v738
    %v745 = vmul.f32 1.0, %v744
    %v746 = vrcp.pop %v739
    %v747 = vmul.f32 1.0, %v746
    %v748 = vmul.f32 %v710, %v741
    %v749 = vmul.f32 %v713, %v743
    %v750 = vmul.f32 %v718, %v745
    %v751 = vmul.f32 %v721, %v747
    %s752 = scalar_lea.vmem %s6, 32
    %v753 = vld [vmem:[%s752] sm:$0xf]
    %v754 = vld [vmem:[%s752 + $0x4] sm:$0xf]
    %v755 = vld [vmem:[%s752 + $0x8] sm:$0xf]
    %v756 = vld [vmem:[%s752 + $0xc] sm:$0xf]
    %v757 = vpack.c.bf16 %v749, %v748
    %v758 = vpack.c.bf16 %v751, %v750
    %s759 = scalar_lea.vmem %s7, 64
    %v760 = vld [vmem:[%s759] sm:$0xff]
    %v761 = vld [vmem:[%s759 + $0x8] sm:$0xff]
    %v762 = vld [vmem:[%s759 + $0x10] sm:$0xff]
    %v763 = vld [vmem:[%s759 + $0x18] sm:$0xff]
    %765 = vset.pattern.permute.xlu0 0
    %766 = vperm.xlu0 %765, %v760
    %v767 = vpop.permute.xlu0 %766
    %770 = vset.pattern.permute.xlu0 0
    %771 = vperm.xlu0 %770, %v761
    %v772 = vpop.permute.xlu0 %771
    %775 = vset.pattern.permute.xlu0 0
    %776 = vperm.xlu0 %775, %v762
    %v777 = vpop.permute.xlu0 %776
    %780 = vset.pattern.permute.xlu0 0
    %781 = vperm.xlu0 %780, %v763
    %v782 = vpop.permute.xlu0 %781
    %v788 = vunpack.c.l.b16 %v753
    %v789 = vunpack.c.l.b16 %v754
    %v790 = vunpack.c.l.b16 %v755
    %v791 = vunpack.c.l.b16 %v756
    %v792 = vpack.c.b16 %v789, %v788
    %v793 = vpack.c.b16 %v791, %v790
    %v795 = vsel %vm430, %v792, 0
    %v798 = vsel %vm430, %v793, 0
    %800 = vmatprep.subr.bf16.mxu0 0
    %801 = vmatpush1.bf16.msra.mxu0 %v757
    %802 = vmatprep.subr.bf16.mxu0 0
    %803 = vmatpush1.bf16.msra.mxu0 %v758
    %804 = vmatprep.subr.bf16.mxu0 0
    %805 = vmatpush1.bf16.msra.mxu0 0
    %806 = vmatprep.subr.bf16.mxu0 0
    %807 = vmatpush1.bf16.msra.mxu0 0
    %808 = vmatprep.subr.bf16.mxu0 0
    %809 = vmatpush1.bf16.msra.mxu0 0
    %810 = vmatprep.subr.bf16.mxu0 0
    %811 = vmatpush1.bf16.msra.mxu0 0
    %812 = vmatprep.subr.bf16.mxu0 0
    %813 = vmatpush1.bf16.msra.mxu0 0
    %814 = vmatprep.subr.bf16.mxu0 0
    %815 = vmatpush1.bf16.msra.mxu0 0
    %816 = vmatprep.subr.bf16.mxu0 0
    %817 = vmatpush1.bf16.msra.mxu0 0
    %818 = vmatprep.subr.bf16.mxu0 0
    %819 = vmatpush1.bf16.msra.mxu0 0
    %820 = vmatprep.subr.bf16.mxu0 0
    %821 = vmatpush1.bf16.msra.mxu0 0
    %822 = vmatprep.subr.bf16.mxu0 0
    %823 = vmatpush1.bf16.msra.mxu0 0
    %824 = vmatprep.subr.bf16.mxu0 0
    %825 = vmatpush1.bf16.msra.mxu0 0
    %826 = vmatprep.subr.bf16.mxu0 0
    %827 = vmatpush1.bf16.msra.mxu0 0
    %828 = vmatprep.subr.bf16.mxu0 0
    %829 = vmatpush1.bf16.msra.mxu0 0
    %830 = vmatprep.subr.bf16.mxu0 0
    %831 = vmatpush1.bf16.msra.mxu0 0
    %832 = vmatprep.mubr.bf16.mxu0 0
    %833 = vmatmul.mubr.bf16.gmra.mrb[0].mxu0 %v795
    %v834 = vpop.f32.mrb[0].mxu0
    %v835 = vadd.f32 %v767, %v834
    %v836 = vpop.f32.mrb[0].mxu0
    %v837 = vpop.f32.mrb[0].mxu0
    %v838 = vadd.f32 %v772, %v837
    %v839 = vpop.f32.mrb[0].mxu0
    %840 = vmatprep.mubr.bf16.mxu0 0
    %841 = vmatmul.mubr.bf16.gmra.mrb[0].mxu0 %v798
    %v842 = vpop.f32.mrb[0].mxu0
    %v843 = vadd.f32 %v777, %v842
    %v844 = vpop.f32.mrb[0].mxu0
    %v845 = vpop.f32.mrb[0].mxu0
    %v846 = vadd.f32 %v782, %v845
    %v847 = vpop.f32.mrb[0].mxu0
    %848 = vdwg.mxu0
    %vm849 = vcmask 130048
    %850 = vst.msk [vmem:[%s8] sm:$0xff] %vm849, %v835
    %851 = vst.msk [vmem:[%s8 + $0x8] sm:$0xff] %vm849, %v838
    %852 = vst.msk [vmem:[%s8 + $0x10] sm:$0xff] %vm849, %v843
    %853 = vst.msk [vmem:[%s8 + $0x18] sm:$0xff] %vm849, %v846
  $region37: #{tpu_custom_call.1} parent=0 // pred_fallthru
    _
  // Predicated region
  $region38: #{tpu_custom_call.1} parent=0 // pred_check
    _
  $region39: #{tpu_custom_call.1} parent=0 // pred_check_branch
    %855 = sbr.rel (0) target = $region41
  $region40: #{tpu_custom_call.1} parent=0 // pred_region
    _
  $region41: #{tpu_custom_call.1} parent=0 // pred_fallthru
    _
  // Predicated region
  $region42: #{tpu_custom_call.1} parent=0 // pred_check
    _
  $region43: #{tpu_custom_call.1} parent=0 // pred_check_branch
    %857 = sbr.rel (0) target = $region45
  $region44: #{tpu_custom_call.1} parent=0 // pred_region
    _
  $region45: #{tpu_custom_call.1} parent=0 // pred_fallthru
    _

</llo_original>
